<compile_context>
chip_gen: v7x
topology: tpu7x:2x2x1
jax: 0.10.0
libtpu: 0.0.40
codegen_flags: <defaults>
</compile_context>

<pallas_src>
import functools

import jax
import jax.numpy as jnp
from jax import lax
from jax.experimental import pallas as pl
from jax.experimental.pallas import tpu as pltpu

LANES = 128
TARGET_BLOCK_BYTES = 2 * 1024 * 1024     # ~2 MiB DMA chunk, dtype independent
ACC_ROWS_MAX = 64                        # 8 independent f32 accumulator vregs
SMALL_FASTPATH_ELEMS = 64 * 1024         # below this a fused XLA reduce wins
VMEM_LIMIT_BYTES = 32 * 1024 * 1024      # safe on v5e/v6e/v7x


def _num_tensorcores() -> int:
    """2 only on v7x (two separately-scheduled TensorCores per chip)."""
    try:
        kind = jax.devices()[0].device_kind.lower()
    except Exception:
        return 1
    return 2 if "v7" in kind else 1


def _adv_loss_kernel(x_ref, o_ref, acc_ref, *, row_block, acc_rows,
                     blocks_per_split, valid_rows, needs_mask):
    """Grid = (split, row-block).  acc_ref is a small (acc_rows, LANES) f32 acc."""
    p = pl.program_id(0)   # TensorCore split (CORE_PARALLEL on v7x, size 1 else)
    j = pl.program_id(1)   # row-block walk (reduction axis, last)

    @pl.when(j == 0)
    def _():
        acc_ref[...] = jnp.zeros_like(acc_ref)

    def _squared_error():
        d = x_ref[...].astype(jnp.float32) - 1.0
        return d * d                     # 0.5 folded into the final normalisation

    def _accumulate(sq):
        # Fold (row_block, LANES) -> (acc_rows, LANES) with pure VPU adds over
        # >=8 independent accumulation rows; one small RMW of acc_ref per step.
        folded = sq.reshape(row_block // acc_rows, acc_rows, LANES).sum(axis=0)
        acc_ref[...] += folded

    if needs_mask:
        # Logical block index, so clamped (re-read) blocks are never counted.
        logical_block = p * blocks_per_split + j
        row0 = logical_block * row_block
        is_full = row0 + row_block <= valid_rows
        is_partial = jnp.logical_and(jnp.logical_not(is_full), row0 < valid_rows)

        @pl.when(is_full)
        def _():                          # fast path: no mask arithmetic
            _accumulate(_squared_error())

        @pl.when(is_partial)
        def _():                          # only the single tail block pays this
            sq = _squared_error()
            row = lax.broadcasted_iota(jnp.int32, sq.shape, 0) + row0
            _accumulate(jnp.where(row < valid_rows, sq, 0.0))
        # logical_block beyond the real range (clamped duplicate on the short
        # split): neither branch fires -> contributes nothing.
    else:
        _accumulate(_squared_error())

    @pl.when(j == blocks_per_split - 1)
    def _():
        # One tiny cross-sublane reduce per split; wrapper sums the lane row(s).
        o_ref[...] = jnp.sum(acc_ref[...], axis=0, keepdims=True)


def adversarial_loss(fake_outputs: jax.Array, *, force_pallas: bool = False) -> jax.Array:
    """Equivalent of torch.mean((fake_outputs - 1) ** 2 / 2)."""
    n_elems = fake_outputs.size
    if n_elems == 0:
        return jnp.float32(jnp.nan)      # torch.mean over empty tensor -> nan

    flat = fake_outputs.reshape(-1)      # keep original dtype; cast in-kernel
    rows = n_elems // LANES
    rem = n_elems - rows * LANES

    # Small / degenerate inputs: fused XLA reduce beats kernel launch overhead.
    if rows < 8 or (n_elems <= SMALL_FASTPATH_ELEMS and not force_pallas):
        xf = flat.astype(jnp.float32)
        return jnp.sum((xf - 1.0) ** 2) / jnp.float32(2 * n_elems)

    # Lane-dense slab of the full 128-lane rows; the <128-element remainder is
    # added via a tiny jnp expression below (no full-array jnp.pad copy).
    slab = flat[: rows * LANES].reshape(rows, LANES)

    itemsize = jnp.dtype(fake_outputs.dtype).itemsize
    desired_rows = max(8, TARGET_BLOCK_BYTES // (LANES * itemsize))
    row_block = min(desired_rows, rows)
    row_block = max(8, (row_block // 8) * 8)     # sublane-aligned, <= rows

    acc_rows = ACC_ROWS_MAX
    while row_block % acc_rows:
        acc_rows //= 2

    n_blocks = pl.cdiv(rows, row_block)
    nsplit = min(_num_tensorcores(), n_blocks)   # 2 only on v7x
    blocks_per_split = pl.cdiv(n_blocks, nsplit)
    needs_mask = (rows % row_block != 0) or (nsplit * blocks_per_split != n_blocks)

    kernel = functools.partial(
        _adv_loss_kernel,
        row_block=row_block,
        acc_rows=acc_rows,
        blocks_per_split=blocks_per_split,
        valid_rows=rows,
        needs_mask=needs_mask,
    )

    def x_index_map(p, j):
        blk = p * blocks_per_split + j
        # Clamp so a short split never issues an out-of-bounds DMA; the kernel
        # skips accumulation for clamped (duplicate) blocks.
        return (jnp.minimum(blk, n_blocks - 1), 0)

    # TODO(synk): verify CORE_PARALLEL actually shards this axis across both
    # TensorCores on real v7x hardware (unreachable on v5e/v6e: nsplit == 1).
    lead_sem = pltpu.CORE_PARALLEL if nsplit > 1 else pltpu.ARBITRARY

    partials = pl.pallas_call(
        kernel,
        out_shape=jax.ShapeDtypeStruct((nsplit, LANES), jnp.float32),
        grid=(nsplit, blocks_per_split),
        in_specs=[pl.BlockSpec((row_block, LANES), x_index_map)],
        out_specs=pl.BlockSpec((1, LANES), lambda p, j: (p, 0)),
        scratch_shapes=[pltpu.VMEM((acc_rows, LANES), jnp.float32)],
        compiler_params=pltpu.CompilerParams(
            dimension_semantics=(lead_sem, pltpu.ARBITRARY),
            vmem_limit_bytes=VMEM_LIMIT_BYTES,
        ),
    )(slab)

    total = jnp.sum(partials)
    if rem:
        tail = flat[rows * LANES:].astype(jnp.float32)
        total = total + jnp.sum((tail - 1.0) ** 2)

    # mean((x-1)^2 / 2) == sum((x-1)^2) / (2*N)   (0.5 folded in here).
    return total / jnp.float32(2 * n_elems)


if __name__ == "__main__":
    key = jax.random.PRNGKey(0)
    k0, k1, k2 = jax.random.split(key, 3)

    # 1) Spec shape (2,4,16,16): force the Pallas path so the kernel itself runs.
    x0 = jax.random.normal(k0, (2, 4, 16, 16), dtype=jnp.float32)
    out0 = adversarial_loss(x0, force_pallas=True)
    jax.block_until_ready(out0)
    ref0 = jnp.mean((x0 - 1.0) ** 2 / 2.0)
    assert jnp.allclose(out0, ref0, rtol=1e-5, atol=1e-6), (out0, ref0)

    # 2) Same shape through the default small-input (fused XLA) path.
    out0b = adversarial_loss(x0)
    jax.block_until_ready(out0b)
    assert jnp.allclose(out0b, ref0, rtol=1e-5, atol=1e-6), (out0b, ref0)

    # 3) Larger f32 input: multi-block unmasked streaming path (2 MiB blocks).
    x1 = jax.random.normal(k1, (8, 32, 64, 64), dtype=jnp.float32)
    out1 = adversarial_loss(x1)
    jax.block_until_ready(out1)
    ref1 = jnp.mean((x1 - 1.0) ** 2 / 2.0)
    assert jnp.allclose(out1, ref1, rtol=1e-5, atol=1e-6), (out1, ref1)

    # 4) Odd-sized bf16 input: tail-row mask + <128-element remainder path.
    x2 = jax.random.normal(k2, (2, 3, 157, 157), dtype=jnp.bfloat16)
    out2 = adversarial_loss(x2)
    jax.block_until_ready(out2)
    ref2 = jnp.mean((x2.astype(jnp.float32) - 1.0) ** 2 / 2.0)
    assert jnp.allclose(out2, ref2, rtol=1e-4, atol=1e-6), (out2, ref2)

    print("KERNEL_OK")
</pallas_src>

<mosaic_0001>
module attributes {stable_mosaic.version = 11 : i64} {
  func.func @_adv_loss_kernel(%arg0: i32, %arg1: i32, %arg2: memref<16x128xf32, #tpu.memory_space<vmem>>, %arg3: memref<1x128xf32, #tpu.memory_space<vmem>>, %arg4: memref<16x128xf32, #tpu.memory_space<vmem>>) attributes {dimension_semantics = [#tpu.dimension_semantics<arbitrary>, #tpu.dimension_semantics<arbitrary>], iteration_bounds = array<i64: 1, 1>, scalar_prefetch = 0 : i64, scratch_operands = 1 : i64, tpu.core_type = #tpu.core_type<tc>, window_params = [{transform_indices = @transform_0, window_bounds = array<i64: 16, 128>}, {transform_indices = @transform_1, window_bounds = array<i64: 1, 128>}]} {
    %c0_i32 = arith.constant 0 : i32
    %0 = arith.cmpi eq, %arg1, %c0_i32 : i32
    %1 = arith.extui %0 : i1 to i32
    %c0_i32_0 = arith.constant 0 : i32
    %2 = arith.cmpi ne, %1, %c0_i32_0 : i32
    scf.if %2 {
      %cst_9 = arith.constant 0.000000e+00 : f32
      %15 = vector.broadcast %cst_9 : f32 to vector<16x128xf32>
      %c0_10 = arith.constant 0 : index
      %c0_11 = arith.constant 0 : index
      %16 = vector.load %arg4[%c0_10, %c0_11] : memref<16x128xf32, #tpu.memory_space<vmem>>, vector<16x128xf32>
      tpu.vector_store %arg4[%c0_10, %c0_11], %15 {strides = array<i32>} : memref<16x128xf32, #tpu.memory_space<vmem>>, vector<16x128xf32>,
    } else {
    }
    %c0 = arith.constant 0 : index
    %c0_1 = arith.constant 0 : index
    %3 = vector.load %arg2[%c0, %c0_1] : memref<16x128xf32, #tpu.memory_space<vmem>>, vector<16x128xf32>
    %cst = arith.constant 1.000000e+00 : f32
    %4 = vector.broadcast %cst : f32 to vector<16x128xf32>
    %5 = arith.subf %3, %4 : vector<16x128xf32>
    %6 = arith.mulf %5, %5 : vector<16x128xf32>
    %7 = vector.shape_cast %6 : vector<16x128xf32> to vector<1x16x128xf32>
    %cst_2 = arith.constant dense<0.000000e+00> : vector<16x128xf32>
    %8 = vector.multi_reduction <add>, %7, %cst_2 [0] : vector<1x16x128xf32> to vector<16x128xf32>
    %c0_3 = arith.constant 0 : index
    %c0_4 = arith.constant 0 : index
    %9 = vector.load %arg4[%c0_3, %c0_4] : memref<16x128xf32, #tpu.memory_space<vmem>>, vector<16x128xf32>
    %10 = arith.addf %9, %8 : vector<16x128xf32>
    %c0_5 = arith.constant 0 : index
    %c0_6 = arith.constant 0 : index
    %11 = vector.load %arg4[%c0_5, %c0_6] : memref<16x128xf32, #tpu.memory_space<vmem>>, vector<16x128xf32>
    tpu.vector_store %arg4[%c0_5, %c0_6], %10 {strides = array<i32>} : memref<16x128xf32, #tpu.memory_space<vmem>>, vector<16x128xf32>,
    %c0_i32_7 = arith.constant 0 : i32
    %12 = arith.cmpi eq, %arg1, %c0_i32_7 : i32
    %13 = arith.extui %12 : i1 to i32
    %c0_i32_8 = arith.constant 0 : i32
    %14 = arith.cmpi ne, %13, %c0_i32_8 : i32
    scf.if %14 {
      %c0_9 = arith.constant 0 : index
      %c0_10 = arith.constant 0 : index
      %15 = vector.load %arg4[%c0_9, %c0_10] : memref<16x128xf32, #tpu.memory_space<vmem>>, vector<16x128xf32>
      %cst_11 = arith.constant dense<0.000000e+00> : vector<128xf32>
      %16 = vector.multi_reduction <add>, %15, %cst_11 [0] : vector<16x128xf32> to vector<128xf32>
      %17 = vector.shape_cast %16 : vector<128xf32> to vector<1x128xf32>
      %c0_12 = arith.constant 0 : index
      %c0_13 = arith.constant 0 : index
      %18 = vector.load %arg3[%c0_12, %c0_13] : memref<1x128xf32, #tpu.memory_space<vmem>>, vector<1x128xf32>
      tpu.vector_store %arg3[%c0_12, %c0_13], %17 {strides = array<i32>} : memref<1x128xf32, #tpu.memory_space<vmem>>, vector<1x128xf32>,
    } else {
    }
    return
  }
  func.func @transform_0(%arg0: i32, %arg1: i32) -> (i32, i32) {
    %c1_i32 = arith.constant 1 : i32
    %0 = arith.muli %arg0, %c1_i32 : i32
    %1 = arith.addi %0, %arg1 : i32
    %c0_i32 = arith.constant 0 : i32
    %2 = arith.minsi %1, %c0_i32 : i32
    %c0_i32_0 = arith.constant 0 : i32
    %c0_i32_1 = arith.constant 0 : i32
    return %2, %c0_i32_0 : i32, i32
  }
  func.func @transform_1(%arg0: i32, %arg1: i32) -> (i32, i32) {
    %c0_i32 = arith.constant 0 : i32
    %c0_i32_0 = arith.constant 0 : i32
    return %arg0, %c0_i32 : i32, i32
  }
}

</mosaic_0001>

<llo_original>
// kernel: tpu_custom_call.1
$region0: #{tpu_custom_call.1}
  #allocation0 [shape = 'u32[]', space=smem, size = 0x4, offset = 0x4, fixed_abs, tag = 'smem constant byte address 0x4 - core index']
  #allocation1 [shape = 'u32[144,128]{1,0:T(1,128)}', space=vmem, size = 0x12000, scoped, tag = 'internal scratch']
  #allocation2 [shape = 'f32[16,128]{1,0:T(8,128)}', space=vmem, size = 0x2000, scoped, tag = 'scratch operand']
  %s0 = inlined_call_operand.hbm [shape: f32[16,128], index: 0, kind: input, shape index: {}]
  %s1 = inlined_call_operand.hbm [shape: f32[1,128], index: 1, kind: output, shape index: {}]
  %s2 = sld [smem:[#allocation0]]
  $region26: #{tpu_custom_call.1} parent=0
    _
  %s4 = ssub.s32 1, %s2
  %s5 = scalar_select 0, %s4, %s2
  $region1: #{tpu_custom_call.1} parent=0
    #allocation3 [shape = 'u8[8192]{0}', space=vmem, size = 0x2000, scoped, tag = 'input window, operand 0, single buffered']
    #allocation4 [shape = 's32[1]{0}', space=sflag, size = 0x4, scoped, tag = 'scoped memory for tpu_custom_call.1']
    #allocation5 [shape = 's32[1]{0}', space=sflag, size = 0x4, scoped, tag = 'scoped memory for tpu_custom_call.1']
    #allocation6 [shape = 'u8[512]{0}', space=vmem, size = 0x400, scoped, tag = 'output window, operand 0, single buffered']
    %6 = vsyncpa [#allocation4], 0
    %7 = vsyncpa [#allocation5], 0
    // Predicated region
    $region2: #{tpu_custom_call.1} parent=1 // pred_check
      _
    $region3: #{tpu_custom_call.1} parent=1 // pred_check_branch
      %9 = sbr.rel (0) target = $region5
    $region4: #{tpu_custom_call.1} parent=1 // pred_region
      %s10 = sadd.s32 0, 0
      %p11 = scmp.lt.s32.totalorder %s10, 0
      %s12 = scalar_select %p11, %s10, 0
      %s13 = smul.u32 2, %s12
      %s15 = ssub.s32 256, 256
      %16 = vsyncadd [#allocation4], %s15
      %s17 = smul.addr %s13, 128
      %s18 = scalar_lea.hbm %s0, %s17
      %s19 = sshll.u32 [#allocation3], 4
      %s20 = int_to_ptr.vmem [resolvable:$true] %s19
      %25 = dma.hbm_to_vmem [thread:$0]  %s18, 256, %s20, [#allocation4], 128, 128, 8
    $region5: #{tpu_custom_call.1} parent=1 // pred_fallthru
      _
    // Predicated region
    $region6: #{tpu_custom_call.1} parent=1 // pred_check
      _
    $region7: #{tpu_custom_call.1} parent=1 // pred_check_branch
      %27 = sbr.rel (0) target = $region9
    $region8: #{tpu_custom_call.1} parent=1 // pred_region
      %28 = dma.done [#allocation4], 256
    $region9: #{tpu_custom_call.1} parent=1 // pred_fallthru
      _
    %s29 = sadd.s32 0, 0
    %p30 = scmp.lt.s32.totalorder %s29, 0
    %s31 = scalar_select %p30, %s29, 0
    %s32 = smul.u32 2, %s31
    %p33 = scmp.eq.s32.totalorder 0, 0
    // Predicated region
    $region10: #{tpu_custom_call.1} parent=1 // pred_check
      %p34 = pneg %p33
    $region11: #{tpu_custom_call.1} parent=1 // pred_check_branch
      %36 = sbr.rel (%p34) target = $region13
    $region12: #{tpu_custom_call.1} parent=1 // pred_region
      %37 = vst [vmem:[#allocation2] sm:$0xff] 0.0
      %38 = vst [vmem:[#allocation2 + $0x8] sm:$0xff] 0.0
    $region13: #{tpu_custom_call.1} parent=1 // pred_fallthru
      _
    %v39 = vld [vmem:[#allocation3] sm:$0xff]
    %v40 = vld [vmem:[#allocation3 + $0x8] sm:$0xff]
    %v41 = vsub.f32 %v39, 1.0
    %v42 = vsub.f32 %v40, 1.0
    %v43 = vmul.f32 %v41, %v41
    %v44 = vmul.f32 %v42, %v42
    %v45 = vadd.f32 %v43, 0.0
    %v46 = vadd.f32 %v44, 0.0
    %v47 = vld [vmem:[#allocation2] sm:$0xff]
    %v48 = vld [vmem:[#allocation2 + $0x8] sm:$0xff]
    %v49 = vadd.f32 %v47, %v45
    %v50 = vadd.f32 %v48, %v46
    %51 = vst [vmem:[#allocation2] sm:$0xff] %v49
    %52 = vst [vmem:[#allocation2 + $0x8] sm:$0xff] %v50
    // Predicated region
    $region14: #{tpu_custom_call.1} parent=1 // pred_check
      %p53 = pneg %p33
    $region15: #{tpu_custom_call.1} parent=1 // pred_check_branch
      %55 = sbr.rel (%p53) target = $region17
    $region16: #{tpu_custom_call.1} parent=1 // pred_region
      %v56 = vld [vmem:[#allocation2] sm:$0xff]
      %v57 = vld [vmem:[#allocation2 + $0x8] sm:$0xff]
      %v58 = vadd.f32 %v56, %v57
      %v59 = vrot.slane %v58, 4
      %v60 = vadd.f32 %v58, %v59
      %v61 = vrot.slane %v60, 2
      %v62 = vadd.f32 %v60, %v61
      %v63 = vrot.slane %v62, 1
      %v64 = vadd.f32 %v62, %v63
      %65 = vst [vmem:[#allocation6] sm:$0x1] %v64
    $region17: #{tpu_custom_call.1} parent=1 // pred_fallthru
      _
    // Predicated region
    $region18: #{tpu_custom_call.1} parent=1 // pred_check
      _
    $region19: #{tpu_custom_call.1} parent=1 // pred_check_branch
      %67 = sbr.rel (0) target = $region21
    $region20: #{tpu_custom_call.1} parent=1 // pred_region
      %s69 = ssub.s32 16, 16
      %70 = vsyncadd [#allocation5], %s69
      %s72 = sshll.u32 [#allocation6], 4
      %s73 = int_to_ptr.vmem [resolvable:$true] %s72
      %75 = dma.vmem_to_hbm [thread:$0]  %s73, 16, %s1, [#allocation5]
    $region21: #{tpu_custom_call.1} parent=1 // pred_fallthru
      _
    // Predicated region
    $region22: #{tpu_custom_call.1} parent=1 // pred_check
      _
    $region23: #{tpu_custom_call.1} parent=1 // pred_check_branch
      %77 = sbr.rel (0) target = $region25
    $region24: #{tpu_custom_call.1} parent=1 // pred_region
      %78 = dma.done [#allocation5], 16
    $region25: #{tpu_custom_call.1} parent=1 // pred_fallthru
      _
    %79 = vsyncpa [#allocation4], 1
    %80 = vsyncpa [#allocation5], 1

</llo_original>
